<compile_context>
chip_gen: v5e
topology: v5e:2x2
jax: 0.10.0
libtpu: 0.0.40
codegen_flags: <defaults>
</compile_context>

<pallas_src>
import jax
import jax.numpy as jnp
from jax import lax
from jax.experimental import pallas as pl
from jax.experimental.pallas import tpu as pltpu

EPS = 1e-5  # nn.InstanceNorm1d default eps


def adain_kernel(x_ref, scale_ref, bias_ref, o_ref):
    # x_ref:     (1, T_TILE, C)  tile of one batch element's sequence
    # scale_ref: (1, 1, C)       per-batch scale (precomputed in wrapper)
    # bias_ref:  (1, 1, C)       per-batch bias
    # o_ref:     (1, T_TILE, C)
    x = x_ref[...].astype(jnp.float32)

    # InstanceNorm1d on (B, T, C): per-row normalization over the last dim,
    # biased variance, no affine.  Two-pass form for parity with PyTorch.
    mean = jnp.mean(x, axis=-1, keepdims=True)
    var = jnp.mean(jnp.square(x - mean), axis=-1, keepdims=True)
    xn = (x - mean) * lax.rsqrt(var + EPS)

    scale = scale_ref[...].astype(jnp.float32)   # (1, 1, C) broadcasts over T
    bias = bias_ref[...].astype(jnp.float32)
    o_ref[...] = (xn * scale + bias).astype(o_ref.dtype)


def _pick_t_tile(T, C, itemsize, target_block_bytes):
    """Rows per block: ~target_block_bytes, multiple of 8, capped at T."""
    rows = max(8, target_block_bytes // max(1, C * itemsize))
    rows = (rows // 8) * 8
    return T if rows >= T else rows


def adain(x, cond, weight, *, t_tile=None,
          target_block_bytes=2 * 1024 * 1024):
    """x: (B, T, C); cond: (B, 1, Dc) or (B, Dc); weight: (2C, Dc)."""
    if cond.ndim == 2:
        cond = cond[:, None, :]
    B, T, C = x.shape

    # Hoisted conditioning Linear (bias=False): tiny (B, Dc) @ (Dc, C) matmuls
    # done once in XLA.  Pre-splitting the weight avoids slicing sb at col C.
    cond2d = cond[:, 0, :]
    scale = (cond2d @ weight[:C].T)[:, None, :]    # (B, 1, C)
    bias = (cond2d @ weight[C:].T)[:, None, :]     # (B, 1, C)

    itemsize = jnp.dtype(x.dtype).itemsize
    if t_tile is None:
        t_tile = _pick_t_tile(T, C, itemsize, target_block_bytes)
    t_tile = min(t_tile, T)
    if t_tile != T:
        t_tile = max(8, (t_tile // 8) * 8)   # sublane dim must be 8-aligned
    num_t = pl.cdiv(T, t_tile)

    # Double-buffered input + output blocks plus tiny scale/bias + headroom.
    block_bytes = t_tile * C * itemsize
    vmem_limit = int(min(48 * 1024 * 1024,
                         max(16 * 1024 * 1024, 6 * block_bytes)))

    return pl.pallas_call(
        adain_kernel,
        out_shape=jax.ShapeDtypeStruct((B, T, C), x.dtype),
        grid_spec=pltpu.PrefetchScalarGridSpec(
            num_scalar_prefetch=0,
            grid=(B, num_t),
            in_specs=[
                pl.BlockSpec((1, t_tile, C), lambda b, t: (b, t, 0)),
                pl.BlockSpec((1, 1, C), lambda b, t: (b, 0, 0)),
                pl.BlockSpec((1, 1, C), lambda b, t: (b, 0, 0)),
            ],
            out_specs=pl.BlockSpec((1, t_tile, C), lambda b, t: (b, t, 0)),
        ),
        compiler_params=pltpu.CompilerParams(
            dimension_semantics=("parallel", "parallel"),
            vmem_limit_bytes=vmem_limit),
    )(x, scale, bias)


def adain_ref(x, cond, weight):
    """Pure-JAX reference mirroring the PyTorch forward exactly."""
    if cond.ndim == 2:
        cond = cond[:, None, :]
    sb = cond @ weight.T                                   # (B, 1, 2C)
    C = x.shape[-1]
    scale, bias = sb[..., :C], sb[..., C:]
    mean = x.mean(-1, keepdims=True)
    var = ((x - mean) ** 2).mean(-1, keepdims=True)        # biased variance
    xn = (x - mean) / jnp.sqrt(var + EPS)
    return xn * scale + bias


if __name__ == "__main__":
    B, T, d_hid, d_cond = 2, 8, 32, 16

    key = jax.random.PRNGKey(0)
    kx, kc, kw = jax.random.split(key, 3)

    x = jax.random.normal(kx, (B, T, d_hid), dtype=jnp.float32)
    cond = jax.random.normal(kc, (B, 1, d_cond), dtype=jnp.float32)

    # nn.Linear(d_cond, 2*d_hid, bias=False) weight: (2*d_hid, d_cond),
    # kaiming-uniform-style bound 1/sqrt(fan_in) — deterministic synthetic init.
    bound = 1.0 / jnp.sqrt(jnp.float32(d_cond))
    weight = jax.random.uniform(kw, (2 * d_hid, d_cond), dtype=jnp.float32,
                                minval=-bound, maxval=bound)

    out = jax.block_until_ready(adain(x, cond, weight))
    ref = adain_ref(x, cond, weight)

    assert out.shape == (B, T, d_hid)
    assert jnp.allclose(out, ref, atol=1e-5, rtol=1e-5)
    print("KERNEL_OK")
</pallas_src>

<mosaic_0001>
module attributes {stable_mosaic.version = 11 : i64} {
  func.func @adain_kernel(%arg0: i32, %arg1: i32, %arg2: memref<1x8x32xf32, #tpu.memory_space<vmem>>, %arg3: memref<1x1x32xf32, #tpu.memory_space<vmem>>, %arg4: memref<1x1x32xf32, #tpu.memory_space<vmem>>, %arg5: memref<1x8x32xf32, #tpu.memory_space<vmem>>) attributes {dimension_semantics = [#tpu.dimension_semantics<parallel>, #tpu.dimension_semantics<parallel>], iteration_bounds = array<i64: 2, 1>, scalar_prefetch = 0 : i64, scratch_operands = 0 : i64, tpu.core_type = #tpu.core_type<tc>, window_params = [{transform_indices = @transform_0, window_bounds = array<i64: 1, 8, 32>}, {transform_indices = @transform_1, window_bounds = array<i64: 1, 1, 32>}, {transform_indices = @transform_2, window_bounds = array<i64: 1, 1, 32>}, {transform_indices = @transform_3, window_bounds = array<i64: 1, 8, 32>}]} {
    %c0 = arith.constant 0 : index
    %c0_0 = arith.constant 0 : index
    %c0_1 = arith.constant 0 : index
    %0 = vector.load %arg2[%c0, %c0_0, %c0_1] : memref<1x8x32xf32, #tpu.memory_space<vmem>>, vector<1x8x32xf32>
    %cst = arith.constant dense<0.000000e+00> : vector<1x8xf32>
    %1 = vector.multi_reduction <add>, %0, %cst [2] : vector<1x8x32xf32> to vector<1x8xf32>
    %2 = vector.shape_cast %1 : vector<1x8xf32> to vector<1x8x1xf32>
    %cst_2 = arith.constant 3.200000e+01 : f32
    %3 = vector.broadcast %cst_2 : f32 to vector<1x8x1xf32>
    %4 = arith.divf %2, %3 : vector<1x8x1xf32>
    %5 = vector.broadcast %4 : vector<1x8x1xf32> to vector<1x8x32xf32>
    %6 = arith.subf %0, %5 : vector<1x8x32xf32>
    %7 = arith.mulf %6, %6 : vector<1x8x32xf32>
    %cst_3 = arith.constant dense<0.000000e+00> : vector<1x8xf32>
    %8 = vector.multi_reduction <add>, %7, %cst_3 [2] : vector<1x8x32xf32> to vector<1x8xf32>
    %9 = vector.shape_cast %8 : vector<1x8xf32> to vector<1x8x1xf32>
    %cst_4 = arith.constant 3.200000e+01 : f32
    %10 = vector.broadcast %cst_4 : f32 to vector<1x8x1xf32>
    %11 = arith.divf %9, %10 : vector<1x8x1xf32>
    %12 = vector.broadcast %4 : vector<1x8x1xf32> to vector<1x8x32xf32>
    %13 = arith.subf %0, %12 : vector<1x8x32xf32>
    %cst_5 = arith.constant 9.99999974E-6 : f32
    %14 = vector.broadcast %cst_5 : f32 to vector<1x8x1xf32>
    %15 = arith.addf %11, %14 : vector<1x8x1xf32>
    %16 = math.rsqrt %15 : vector<1x8x1xf32>
    %17 = vector.broadcast %16 : vector<1x8x1xf32> to vector<1x8x32xf32>
    %18 = arith.mulf %13, %17 : vector<1x8x32xf32>
    %c0_6 = arith.constant 0 : index
    %c0_7 = arith.constant 0 : index
    %c0_8 = arith.constant 0 : index
    %19 = vector.load %arg3[%c0_6, %c0_7, %c0_8] : memref<1x1x32xf32, #tpu.memory_space<vmem>>, vector<1x1x32xf32>
    %c0_9 = arith.constant 0 : index
    %c0_10 = arith.constant 0 : index
    %c0_11 = arith.constant 0 : index
    %20 = vector.load %arg4[%c0_9, %c0_10, %c0_11] : memref<1x1x32xf32, #tpu.memory_space<vmem>>, vector<1x1x32xf32>
    %21 = vector.broadcast %19 : vector<1x1x32xf32> to vector<1x8x32xf32>
    %22 = arith.mulf %18, %21 : vector<1x8x32xf32>
    %23 = vector.broadcast %20 : vector<1x1x32xf32> to vector<1x8x32xf32>
    %24 = arith.addf %22, %23 : vector<1x8x32xf32>
    %c0_12 = arith.constant 0 : index
    %c0_13 = arith.constant 0 : index
    %c0_14 = arith.constant 0 : index
    %25 = vector.load %arg5[%c0_12, %c0_13, %c0_14] : memref<1x8x32xf32, #tpu.memory_space<vmem>>, vector<1x8x32xf32>
    tpu.vector_store %arg5[%c0_12, %c0_13, %c0_14], %24 {strides = array<i32>} : memref<1x8x32xf32, #tpu.memory_space<vmem>>, vector<1x8x32xf32>,
    return
  }
  func.func @transform_0(%arg0: i32, %arg1: i32) -> (i32, i32, i32) {
    %c0_i32 = arith.constant 0 : i32
    %c0_i32_0 = arith.constant 0 : i32
    return %arg0, %arg1, %c0_i32 : i32, i32, i32
  }
  func.func @transform_1(%arg0: i32, %arg1: i32) -> (i32, i32, i32) {
    %c0_i32 = arith.constant 0 : i32
    %c0_i32_0 = arith.constant 0 : i32
    %c0_i32_1 = arith.constant 0 : i32
    return %arg0, %c0_i32, %c0_i32_0 : i32, i32, i32
  }
  func.func @transform_2(%arg0: i32, %arg1: i32) -> (i32, i32, i32) {
    %c0_i32 = arith.constant 0 : i32
    %c0_i32_0 = arith.constant 0 : i32
    %c0_i32_1 = arith.constant 0 : i32
    return %arg0, %c0_i32, %c0_i32_0 : i32, i32, i32
  }
  func.func @transform_3(%arg0: i32, %arg1: i32) -> (i32, i32, i32) {
    %c0_i32 = arith.constant 0 : i32
    %c0_i32_0 = arith.constant 0 : i32
    return %arg0, %arg1, %c0_i32 : i32, i32, i32
  }
}

</mosaic_0001>

<llo_original>
// kernel: tpu_custom_call.1
$region0: #{tpu_custom_call.1}
  #allocation0 [shape = 'u32[]', space=smem, size = 0x4, offset = 0x4, fixed_abs, tag = 'smem constant byte address 0x4 - core index']
  #allocation1 [shape = 'u32[72,128]{1,0:T(1,128)}', space=vmem, size = 0x9000, scoped, tag = 'internal scratch']
  %s0 = inlined_call_operand.hbm [shape: f32[2,8,32], index: 0, kind: input, shape index: {}]
  %s1 = inlined_call_operand.hbm [shape: f32[2,1,32], index: 1, kind: input, shape index: {}]
  %s2 = inlined_call_operand.hbm [shape: f32[2,1,32], index: 2, kind: input, shape index: {}]
  %s3 = inlined_call_operand.hbm [shape: f32[2,8,32], index: 3, kind: output, shape index: {}]
  %s4 = sld [smem:[#allocation0]]
  $region57: #{tpu_custom_call.1} parent=0
    _
  %s6 = ssub.s32 1, %s4
  %s7 = scalar_select 0, %s6, %s4
  $region1: #{tpu_custom_call.1} parent=0
    #allocation2 [shape = 'u8[8192]{0}', space=vmem, size = 0x2000, scoped, tag = 'input window, operand 0']
    #allocation3 [shape = 's32[2]{0}', space=sflag, size = 0x8, scoped, tag = 'scoped memory for tpu_custom_call.1']
    #allocation4 [shape = 's32[2]{0}', space=sflag, size = 0x8, scoped, tag = 'scoped memory for tpu_custom_call.1']
    #allocation5 [shape = 'u8[1024]{0}', space=vmem, size = 0x400, scoped, tag = 'input window, operand 1']
    #allocation6 [shape = 's32[2]{0}', space=sflag, size = 0x8, scoped, tag = 'scoped memory for tpu_custom_call.1']
    #allocation7 [shape = 'u8[1024]{0}', space=vmem, size = 0x400, scoped, tag = 'input window, operand 2']
    #allocation8 [shape = 'u8[8192]{0}', space=vmem, size = 0x2000, scoped, tag = 'output window, operand 0']
    %8 = vsyncpa [#allocation3], 0
    %s9 = scalar_lea.sflag [#allocation3], 1
    %10 = vsyncpa %s9, 0
    %11 = vsyncpa [#allocation6], 0
    %s12 = scalar_lea.sflag [#allocation6], 1
    %13 = vsyncpa %s12, 0
    %14 = vsyncpa [#allocation4], 0
    %s15 = scalar_lea.sflag [#allocation4], 1
    %16 = vsyncpa %s15, 0
    loop: start=0, step=1, limit=4
    $region2: #{tpu_custom_call.1} parent=1 // loop_pre_header
      _
    $region3: #{tpu_custom_call.1} parent=1 // loop_header
      %s18 = sphi 0, %s22
      %p19 = scmp.ge.s32.totalorder %s18, 4
      %s25 = sphi 0, %s37
      %s26 = sphi 0, %s33
      %s27 = sphi 0, %s25
      %s28 = sphi 0, %s26
      %s29 = sphi 0, %s27
      %s30 = sphi 0, %s28
      %s42 = sphi 0, %s44
      %s45 = sphi 0, %s42
      %s46 = sphi 0, %s45
      %s62 = sphi 0, %s46
      %s68 = sphi 0, %s70
      %s71 = sphi 0, %s68
      %s72 = sphi 0, %s71
      %s88 = sphi 0, %s72
      %s94 = sphi 0, %s96
      %s97 = sphi 0, %s94
      %s98 = sphi 0, %s97
      %s114 = sphi 0, %s98
      %s122 = sphi 0, %s124
      %s125 = sphi 0, %s122
      %s126 = sphi 0, %s125
      %s142 = sphi 0, %s126
    $region4: #{tpu_custom_call.1} parent=1 // loop_header_branch
      %21 = sbr.rel (%p19) target = $region8
    $region5: #{tpu_custom_call.1} parent=1 // loop_body
      %s23 = ssub.s32 %s18, 1
      %s24 = ssub.s32 %s18, 2
      %s31 = sadd.s32 1, %s26
      %p32 = scmp.ge.s32.totalorder %s31, 1
      %s33 = scalar_select %p32, 0, %s31
      %s34 = sadd.s32 1, %s25
      %s35 = scalar_select %p32, %s34, %s25
      %p36 = scmp.ge.s32.totalorder %s35, 2
      %s37 = scalar_select %p36, 0, %s35
      %s38 = ssub.s32 %s25, %s37
      %s39 = ssub.s32 %s26, %s33
      %s40 = sor.u32 %s38, %s39
      %p41 = scmp.eq.s32.totalorder %s40, 0
      %s43 = sadd.s32 %s42, 1
      %s44 = scalar_select %p41, %s42, %s43
      %p47 = pneg %p41
      %p48 = scmp.eq.s32.totalorder %s18, 1
      %p49 = por %p47, %p48
      %p50 = scmp.ne.s32.totalorder %s42, %s45
      %p51 = scmp.eq.s32.totalorder %s18, 0
      %p52 = por %p50, %p51
      %p53 = scmp.ne.s32.totalorder %s42, %s45
      %p54 = scmp.eq.s32.totalorder %s23, 1
      %p55 = por %p53, %p54
      %p56 = scmp.ne.s32.totalorder %s45, %s46
      %p57 = scmp.eq.s32.totalorder %s23, 0
      %p58 = por %p56, %p57
      %p59 = scmp.ne.s32.totalorder %s45, %s46
      %p60 = scmp.eq.s32.totalorder %s24, 1
      %p61 = por %p59, %p60
      %p63 = scmp.ne.s32.totalorder %s46, %s62
      %p64 = scmp.eq.s32.totalorder %s24, 0
      %p65 = por %p63, %p64
      %s66 = ssub.s32 %s25, %s37
      %p67 = scmp.eq.s32.totalorder %s66, 0
      %s69 = sadd.s32 %s68, 1
      %s70 = scalar_select %p67, %s68, %s69
      %p73 = pneg %p67
      %p74 = scmp.eq.s32.totalorder %s18, 1
      %p75 = por %p73, %p74
      %p76 = scmp.ne.s32.totalorder %s68, %s71
      %p77 = scmp.eq.s32.totalorder %s18, 0
      %p78 = por %p76, %p77
      %p79 = scmp.ne.s32.totalorder %s68, %s71
      %p80 = scmp.eq.s32.totalorder %s23, 1
      %p81 = por %p79, %p80
      %p82 = scmp.ne.s32.totalorder %s71, %s72
      %p83 = scmp.eq.s32.totalorder %s23, 0
      %p84 = por %p82, %p83
      %p85 = scmp.ne.s32.totalorder %s71, %s72
      %p86 = scmp.eq.s32.totalorder %s24, 1
      %p87 = por %p85, %p86
      %p89 = scmp.ne.s32.totalorder %s72, %s88
      %p90 = scmp.eq.s32.totalorder %s24, 0
      %p91 = por %p89, %p90
      %s92 = ssub.s32 %s25, %s37
      %p93 = scmp.eq.s32.totalorder %s92, 0
      %s95 = sadd.s32 %s94, 1
      %s96 = scalar_select %p93, %s94, %s95
      %p99 = pneg %p93
      %p100 = scmp.eq.s32.totalorder %s18, 1
      %p101 = por %p99, %p100
      %p102 = scmp.ne.s32.totalorder %s94, %s97
      %p103 = scmp.eq.s32.totalorder %s18, 0
      %p104 = por %p102, %p103
      %p105 = scmp.ne.s32.totalorder %s94, %s97
      %p106 = scmp.eq.s32.totalorder %s23, 1
      %p107 = por %p105, %p106
      %p108 = scmp.ne.s32.totalorder %s97, %s98
      %p109 = scmp.eq.s32.totalorder %s23, 0
      %p110 = por %p108, %p109
      %p111 = scmp.ne.s32.totalorder %s97, %s98
      %p112 = scmp.eq.s32.totalorder %s24, 1
      %p113 = por %p111, %p112
      %p115 = scmp.ne.s32.totalorder %s98, %s114
      %p116 = scmp.eq.s32.totalorder %s24, 0
      %p117 = por %p115, %p116
      %s118 = ssub.s32 %s25, %s37
      %s119 = ssub.s32 %s26, %s33
      %s120 = sor.u32 %s118, %s119
      %p121 = scmp.eq.s32.totalorder %s120, 0
      %s123 = sadd.s32 %s122, 1
      %s124 = scalar_select %p121, %s122, %s123
      %p127 = pneg %p121
      %p128 = scmp.eq.s32.totalorder %s18, 1
      %p129 = por %p127, %p128
      %p130 = scmp.ne.s32.totalorder %s122, %s125
      %p131 = scmp.eq.s32.totalorder %s18, 0
      %p132 = por %p130, %p131
      %p133 = scmp.ne.s32.totalorder %s122, %s125
      %p134 = scmp.eq.s32.totalorder %s23, 1
      %p135 = por %p133, %p134
      %p136 = scmp.ne.s32.totalorder %s125, %s126
      %p137 = scmp.eq.s32.totalorder %s23, 0
      %p138 = por %p136, %p137
      %p139 = scmp.ne.s32.totalorder %s125, %s126
      %p140 = scmp.eq.s32.totalorder %s24, 1
      %p141 = por %p139, %p140
      %p143 = scmp.ne.s32.totalorder %s126, %s142
      %p144 = scmp.eq.s32.totalorder %s24, 0
      %p145 = por %p143, %p144
      %p146 = scmp.le.s32.totalorder 1, %s18
      %p147 = scmp.lt.s32.totalorder %s18, 3
      %p148 = pnand %p146, %p147
      %p149 = pneg %p148
      // Predicated region
      $region9: #{tpu_custom_call.1} parent=5 // pred_check
        _
      $region10: #{tpu_custom_call.1} parent=5 // pred_check_branch
        %151 = sbr.rel (%p148) target = $region12
      $region11: #{tpu_custom_call.1} parent=5 // pred_region
        %s152 = ssub.s32 %s18, 1
      $region12: #{tpu_custom_call.1} parent=5 // pred_fallthru
        _
      %p153 = scmp.lt.s32.totalorder %s18, 2
      // Predicated region
      $region13: #{tpu_custom_call.1} parent=5 // pred_check
        %p154 = pneg %p153
      $region14: #{tpu_custom_call.1} parent=5 // pred_check_branch
        %156 = sbr.rel (%p154) target = $region16
      $region15: #{tpu_custom_call.1} parent=5 // pred_region
        // Predicated region
        $region17: #{tpu_custom_call.1} parent=15 // pred_check
          %p157 = pneg %p52
        $region18: #{tpu_custom_call.1} parent=15 // pred_check_branch
          %159 = sbr.rel (%p157) target = $region20
        $region19: #{tpu_custom_call.1} parent=15 // pred_region
          %s160 = sand.u32 %s42, 1
          %s161 = scalar_lea.sflag [#allocation3], %s160
          %s162 = sand.u32 %s42, 1
          %s163 = smul.addr %s162, 8
          %s164 = scalar_lea.vmem [#allocation2], %s163
          %166 = vsyncadd %s161, 0
          %s167 = sadd.s32 %s26, %s25
          %s168 = smul.addr %s167, 8
          %s169 = scalar_lea.hbm %s0, %s168
          %s171 = sshll.u32 %s169, 4
          %s172 = int_to_ptr.hbm [resolvable:$true] %s171
          %s173 = sshll.u32 %s164, 4
          %s174 = int_to_ptr.vmem [resolvable:$true] %s173
          %176 = dma.hbm_to_vmem [thread:$0]  %s172, 128, %s174, %s161
        $region20: #{tpu_custom_call.1} parent=15 // pred_fallthru
          _
        // Predicated region
        $region21: #{tpu_custom_call.1} parent=15 // pred_check
          %p177 = pneg %p78
        $region22: #{tpu_custom_call.1} parent=15 // pred_check_branch
          %179 = sbr.rel (%p177) target = $region24
        $region23: #{tpu_custom_call.1} parent=15 // pred_region
          %s180 = sand.u32 %s18, 1
          %s181 = scalar_lea.sflag [#allocation6], %s180
          %s182 = sand.u32 %s68, 1
          %s183 = scalar_lea.vmem [#allocation5], %s182
          %185 = vsyncadd %s181, 0
          %s186 = scalar_lea.hbm %s1, %s25
          %s188 = sshll.u32 %s186, 4
          %s189 = int_to_ptr.hbm [resolvable:$true] %s188
          %s190 = sshll.u32 %s183, 4
          %s191 = int_to_ptr.vmem [resolvable:$true] %s190
          %193 = dma.hbm_to_vmem [thread:$0]  %s189, 16, %s191, %s181
        $region24: #{tpu_custom_call.1} parent=15 // pred_fallthru
          _
        // Predicated region
        $region25: #{tpu_custom_call.1} parent=15 // pred_check
          %p194 = pneg %p104
        $region26: #{tpu_custom_call.1} parent=15 // pred_check_branch
          %196 = sbr.rel (%p194) target = $region28
        $region27: #{tpu_custom_call.1} parent=15 // pred_region
          %s197 = sand.u32 %s18, 1
          %s198 = scalar_lea.sflag [#allocation6], %s197
          %s199 = sand.u32 %s94, 1
          %s200 = scalar_lea.vmem [#allocation7], %s199
          %202 = vsyncadd %s198, 0
          %s203 = scalar_lea.hbm %s2, %s25
          %s205 = sshll.u32 %s203, 4
          %s206 = int_to_ptr.hbm [resolvable:$true] %s205
          %s207 = sshll.u32 %s200, 4
          %s208 = int_to_ptr.vmem [resolvable:$true] %s207
          %210 = dma.hbm_to_vmem [thread:$0]  %s206, 16, %s208, %s198
        $region28: #{tpu_custom_call.1} parent=15 // pred_fallthru
          _
      $region16: #{tpu_custom_call.1} parent=5 // pred_fallthru
        _
      %p211 = scmp.le.s32.totalorder 1, %s18
      %p212 = scmp.lt.s32.totalorder %s18, 3
      %p213 = pnand %p211, %p212
      %p214 = pneg %p213
      // Predicated region
      $region29: #{tpu_custom_call.1} parent=5 // pred_check
        _
      $region30: #{tpu_custom_call.1} parent=5 // pred_check_branch
        %216 = sbr.rel (%p213) target = $region32
      $region31: #{tpu_custom_call.1} parent=5 // pred_region
        %s217 = ssub.s32 %s18, 1
        %s218 = sand.u32 %s45, 1
        %s219 = scalar_lea.sflag [#allocation3], %s218
        %s220 = sand.u32 %s45, 1
        %s221 = smul.addr %s220, 8
        %s222 = scalar_lea.vmem [#allocation2], %s221
        // Predicated region
        $region33: #{tpu_custom_call.1} parent=31 // pred_check
          %p223 = pneg %p58
        $region34: #{tpu_custom_call.1} parent=31 // pred_check_branch
          %225 = sbr.rel (%p223) target = $region36
        $region35: #{tpu_custom_call.1} parent=31 // pred_region
          %227 = dma.done %s219, 128
        $region36: #{tpu_custom_call.1} parent=31 // pred_fallthru
          _
        %s228 = sand.u32 %s23, 1
        %s229 = scalar_lea.sflag [#allocation6], %s228
        %s230 = sand.u32 %s71, 1
        %s231 = scalar_lea.vmem [#allocation5], %s230
        // Predicated region
        $region37: #{tpu_custom_call.1} parent=31 // pred_check
          %p232 = pneg %p84
        $region38: #{tpu_custom_call.1} parent=31 // pred_check_branch
          %234 = sbr.rel (%p232) target = $region40
        $region39: #{tpu_custom_call.1} parent=31 // pred_region
          %236 = dma.done %s229, 16
        $region40: #{tpu_custom_call.1} parent=31 // pred_fallthru
          _
        %s237 = sand.u32 %s23, 1
        %s238 = scalar_lea.sflag [#allocation6], %s237
        %s239 = sand.u32 %s97, 1
        %s240 = scalar_lea.vmem [#allocation7], %s239
        // Predicated region
        $region41: #{tpu_custom_call.1} parent=31 // pred_check
          %p241 = pneg %p110
        $region42: #{tpu_custom_call.1} parent=31 // pred_check_branch
          %243 = sbr.rel (%p241) target = $region44
        $region43: #{tpu_custom_call.1} parent=31 // pred_region
          %245 = dma.done %s238, 16
        $region44: #{tpu_custom_call.1} parent=31 // pred_fallthru
          _
        %s246 = sand.u32 %s45, 1
        %s247 = scalar_lea.sflag [#allocation3], %s246
        %s248 = sand.u32 %s45, 1
        %s249 = smul.addr %s248, 8
        %s250 = scalar_lea.vmem [#allocation2], %s249
        %p251 = pneg %p58
        %p252 = pneg %p55
        %s253 = sand.u32 %s23, 1
        %s254 = scalar_lea.sflag [#allocation6], %s253
        %s255 = sand.u32 %s71, 1
        %s256 = scalar_lea.vmem [#allocation5], %s255
        %p257 = pneg %p84
        %p258 = pneg %p81
        %s259 = sand.u32 %s23, 1
        %s260 = scalar_lea.sflag [#allocation6], %s259
        %s261 = sand.u32 %s97, 1
        %s262 = scalar_lea.vmem [#allocation7], %s261
        %p263 = pneg %p110
        %p264 = pneg %p107
        %p265 = pneg %p138
        %p266 = pneg %p135
        %s267 = sand.u32 %s125, 1
        %s268 = scalar_lea.sflag [#allocation4], %s267
        %s269 = sand.u32 %s125, 1
        %s270 = smul.addr %s269, 8
        %s271 = scalar_lea.vmem [#allocation8], %s270
        %v272 = vld [vmem:[%s222] sm:$0xff]
        %vm273 = vcmask 261120
        %v274 = vsel %vm273, %v272, 0.0
        %275 = vadd.xlane.f32.xlu0 %v274
        %v276 = vpop.xlane.xlu0 %275
        %v277 = vrcp.pop 32.0
        %v278 = vmul.f32 32.0, %v277
        %v279 = vsub.f32 1.0, %v278
        %v280 = vmul.f32 %v277, %v279
        %v281 = vadd.f32 %v277, %v280
        %vm282 = vweird.f32 %v277
        %v283 = vsel %vm282, %v277, %v281
        %v284 = vmul.f32 %v276, %v283
        %v285 = vsub.f32 %v272, %v284
        %v286 = vmul.f32 %v285, %v285
        %v287 = vsel %vm273, %v286, 0.0
        %288 = vadd.xlane.f32.xlu0 %v287
        %v289 = vpop.xlane.xlu0 %288
        %v290 = vmul.f32 %v289, %v283
        %v291 = vadd.f32 %v290, 1e-05
        %v292 = vrsqrt.pop %v291
        %v293 = vmul.f32 %v292, %v291
        %v294 = vmul.f32 %v293, %v292
        %v295 = vmul.f32 0.5, %v294
        %v296 = vsub.f32 1.5, %v295
        %v297 = vmul.f32 %v292, %v296
        %vm298 = vweird.f32 %v291
        %vm299 = vweird.f32 %v292
        %vm300 = vmor %vm298, %vm299
        %v301 = vsel %vm300, %v292, %v297
        %v302 = vmul.f32 %v285, %v301
        %v303 = vld [vmem:[%s231] sm:$0x1]
        %v304 = vld [vmem:[%s240] sm:$0x1]
        %v306 = vperm.slane %v303, 0
        %v308 = vmul.f32 %v302, %v306
        %v310 = vperm.slane %v304, 0
        %v312 = vadd.f32 %v308, %v310
        %313 = vst.msk [vmem:[%s271] sm:$0xff] %vm273, %v312
        %s314 = sand.u32 %s125, 1
        %s315 = scalar_lea.sflag [#allocation4], %s314
        %s316 = sand.u32 %s125, 1
        %s317 = smul.addr %s316, 8
        %s318 = scalar_lea.vmem [#allocation8], %s317
        // Predicated region
        $region45: #{tpu_custom_call.1} parent=31 // pred_check
          %p319 = pneg %p135
        $region46: #{tpu_custom_call.1} parent=31 // pred_check_branch
          %321 = sbr.rel (%p319) target = $region48
        $region47: #{tpu_custom_call.1} parent=31 // pred_region
          %323 = vsyncadd %s315, 0
          %s324 = sadd.s32 %s28, %s27
          %s325 = smul.addr %s324, 8
          %s326 = scalar_lea.hbm %s3, %s325
          %s328 = sshll.u32 %s318, 4
          %s329 = int_to_ptr.vmem [resolvable:$true] %s328
          %s330 = sshll.u32 %s326, 4
          %s331 = int_to_ptr.hbm [resolvable:$true] %s330
          %333 = dma.vmem_to_hbm [thread:$0]  %s329, 128, %s331, %s315
        $region48: #{tpu_custom_call.1} parent=31 // pred_fallthru
          _
      $region32: #{tpu_custom_call.1} parent=5 // pred_fallthru
        _
      %p334 = scmp.le.s32.totalorder 2, %s18
      // Predicated region
      $region49: #{tpu_custom_call.1} parent=5 // pred_check
        %p335 = pneg %p334
      $region50: #{tpu_custom_call.1} parent=5 // pred_check_branch
        %337 = sbr.rel (%p335) target = $region52
      $region51: #{tpu_custom_call.1} parent=5 // pred_region
        %s338 = ssub.s32 %s18, 2
        // Predicated region
        $region53: #{tpu_custom_call.1} parent=51 // pred_check
          %p339 = pneg %p141
        $region54: #{tpu_custom_call.1} parent=51 // pred_check_branch
          %341 = sbr.rel (%p339) target = $region56
        $region55: #{tpu_custom_call.1} parent=51 // pred_region
          %s342 = sand.u32 %s126, 1
          %s343 = scalar_lea.sflag [#allocation4], %s342
          %s344 = sand.u32 %s126, 1
          %s345 = smul.addr %s344, 8
          %s346 = scalar_lea.vmem [#allocation8], %s345
          %348 = dma.done %s343, 128
        $region56: #{tpu_custom_call.1} parent=51 // pred_fallthru
          _
      $region52: #{tpu_custom_call.1} parent=5 // pred_fallthru
        _
    $region6: #{tpu_custom_call.1} parent=1 // loop_footer
      %s22 = sadd.s32 1, %s18
    $region7: #{tpu_custom_call.1} parent=1 // loop_footer_branch
      %17 = sbr.rel target = $region3
    $region8: #{tpu_custom_call.1} parent=1 // loop_exit
      _
    %349 = vsyncpa [#allocation3], 1
    %s350 = scalar_lea.sflag [#allocation3], 1
    %351 = vsyncpa %s350, 1
    %352 = vsyncpa [#allocation6], 1
    %s353 = scalar_lea.sflag [#allocation6], 1
    %354 = vsyncpa %s353, 1
    %355 = vsyncpa [#allocation4], 1
    %s356 = scalar_lea.sflag [#allocation4], 1
    %357 = vsyncpa %s356, 1

</llo_original>
